<compile_context>
chip_gen: v7x
topology: tpu7x:2x2x1
jax: 0.10.0
libtpu: 0.0.40
codegen_flags: <defaults>
</compile_context>

<pallas_src>
import functools

import jax
import jax.numpy as jnp
from jax.experimental import pallas as pl
from jax.experimental.pallas import tpu as pltpu


def _patch_merge_kernel(x_ref, we_ref, wo_ref, cs_ref, b2_ref, o_ref,
                        *, inv_c4: float, eps: float):
    # x_ref:           (TH, 2, Wm, 2C)  one contiguous block; [:,0]=even rows,
    #                                   [:,1]=odd rows of the source image
    # we_ref / wo_ref: (2C, 2Cout)      gamma-folded, row-reordered weights
    # cs_ref / b2_ref: (1, 2Cout)       gamma @ Wr  and  beta @ Wr   (f32)
    # o_ref:           (TH, Wm, 2Cout)
    th, _, wm, two_c = x_ref.shape
    n = th * wm

    x_blk = x_ref[...]                               # single load of the block
    xe = x_blk[:, 0].reshape(n, two_c)               # [x0 | x2] channels
    xo = x_blk[:, 1].reshape(n, two_c)               # [x1 | x3] channels

    # LayerNorm statistics over the full 4C merged-patch vector (lane-dense),
    # computed plane-by-plane with the f32 cast folded into the reduction so
    # no full-tile f32 copies stay live.
    def _plane_stats(v):
        vf = v.astype(jnp.float32)
        return (jnp.sum(vf, axis=-1, keepdims=True),
                jnp.sum(vf * vf, axis=-1, keepdims=True))

    s1e, s2e = _plane_stats(xe)
    s1o, s2o = _plane_stats(xo)
    mean = (s1e + s1o) * inv_c4
    var = (s2e + s2o) * inv_c4 - mean * mean
    var = jnp.maximum(var, 0.0)                      # guard E[x^2]-mean^2 cancellation
    rstd = jax.lax.rsqrt(var + eps)

    # (xcat * gamma) @ W_red^T, split across the two row planes (MXU, f32 acc).
    acc = jnp.dot(xe, we_ref[...], preferred_element_type=jnp.float32)
    acc = acc + jnp.dot(xo, wo_ref[...], preferred_element_type=jnp.float32)

    # y = rstd * ((xcat - mean) @ Wg) + beta @ Wr
    y = rstd * acc + (b2_ref[...] - (rstd * mean) * cs_ref[...])
    o_ref[...] = y.reshape(th, wm, -1).astype(o_ref.dtype)


def prepare_patch_merging_params(w_red, gamma, beta, *, mm_dtype=jnp.float32):
    """Fold LayerNorm affine params into the reduction weight (do once at init).

    w_red: (2*dim, 4*dim) PyTorch Linear weight; gamma/beta: (4*dim,).
    Returns (we, wo, colsum, b2): per-plane weights in `mm_dtype`, f32 rows.
    """
    c4 = w_red.shape[1]
    C = c4 // 4
    wr = w_red.T.astype(jnp.float32)                      # (4C, 2C): y = LN(xc) @ wr
    wg = gamma.astype(jnp.float32)[:, None] * wr          # fold gamma into weight
    colsum = jnp.sum(wg, axis=0, keepdims=True)           # (1, 2Cout) == gamma @ wr
    b2 = (beta.astype(jnp.float32) @ wr)[None, :]         # (1, 2Cout) == beta @ wr
    # 4C channel order is [x0, x1, x2, x3] = [(dh,dw)=(0,0),(1,0),(0,1),(1,1)].
    # The even-row plane carries [x0 | x2]; the odd-row plane carries [x1 | x3].
    we = jnp.concatenate([wg[0:C], wg[2 * C:3 * C]], axis=0).astype(mm_dtype)
    wo = jnp.concatenate([wg[C:2 * C], wg[3 * C:4 * C]], axis=0).astype(mm_dtype)
    return we, wo, colsum, b2


def patch_merging_2d(x, w_red=None, gamma=None, beta=None, *, params=None,
                     eps: float = 1e-5, target_tile_bytes: int = 1 << 20):
    """x: (B, H, W, C); w_red: (2*dim, 4*dim); gamma/beta: (4*dim,).
    Returns (B, H//2, W//2, 2*dim).  Pass `params` (from
    prepare_patch_merging_params) to hoist weight folding out of the call path."""
    B, H, W, C = x.shape
    # TODO(synk): the odd-H/W SHAPE_FIX crop branch of the PyTorch module is not
    # implemented; this kernel requires even spatial dims.
    assert H % 2 == 0 and W % 2 == 0, "PatchMerging2D kernel requires even H, W"
    Hm, Wm = H // 2, W // 2
    c4 = 4 * C
    two_c = 2 * C
    itemsize = x.dtype.itemsize

    # Use native low-precision MXU passes when activations are bf16/fp16.
    mm_dtype = x.dtype if (jnp.issubdtype(x.dtype, jnp.floating)
                           and itemsize < 4) else jnp.float32
    if params is None:
        assert w_red is not None and gamma is not None and beta is not None
        params = prepare_patch_merging_params(w_red, gamma, beta, mm_dtype=mm_dtype)
    we, wo, colsum, b2 = params
    c_out = we.shape[1]                                   # 2 * dim
    assert we.shape == (two_c, c_out)

    # --- free, contiguous reshape: (B, H, W, C) -> (B*Hm, 2, Wm, 2C) --------
    bhm = B * Hm
    xr = x.reshape(bhm, 2, Wm, two_c)

    # --- row-tile / grid sizing ----------------------------------------------
    in_row_bytes = 2 * Wm * two_c * itemsize              # x bytes per merged row
    max_th_bytes = max(1, target_tile_bytes // in_row_bytes)
    min_steps = min(bhm, 8)                               # keep pipeline depth
    steps = max(min_steps, pl.cdiv(bhm, max_th_bytes))
    if steps % 2 == 1 and steps < bhm:                    # balance dual-TC chips
        steps += 1
    steps = min(steps, bhm)
    th = pl.cdiv(bhm, steps)
    steps = pl.cdiv(bhm, th)
    grid = (steps,)

    # --- explicit VMEM budget (safe on v5e 16 MiB scoped / v7x 64 MiB phys) --
    wt_itemsize = jnp.dtype(mm_dtype).itemsize
    in_blk = th * 2 * Wm * two_c * itemsize
    out_blk = th * Wm * c_out * itemsize
    wt_bytes = 2 * two_c * c_out * wt_itemsize + 2 * c_out * 4
    temp_bytes = th * Wm * (2 * two_c + c_out) * 4        # f32 stat temps + f32 acc
    est = 2 * (in_blk + out_blk) + 2 * wt_bytes + temp_bytes
    vmem_limit = int(min(32 << 20, max(16 << 20, 2 * est)))

    kernel = functools.partial(_patch_merge_kernel,
                               inv_c4=1.0 / float(c4), eps=float(eps))

    out = pl.pallas_call(
        kernel,
        out_shape=jax.ShapeDtypeStruct((bhm, Wm, c_out), x.dtype),
        grid=grid,
        in_specs=[
            # one contiguous block per step: both source-row planes at once
            pl.BlockSpec((th, 2, Wm, two_c), lambda i: (i, 0, 0, 0)),
            pl.BlockSpec((two_c, c_out), lambda i: (0, 0)),   # we (VMEM resident)
            pl.BlockSpec((two_c, c_out), lambda i: (0, 0)),   # wo (VMEM resident)
            pl.BlockSpec((1, c_out), lambda i: (0, 0)),       # gamma @ wr
            pl.BlockSpec((1, c_out), lambda i: (0, 0)),       # beta @ wr
        ],
        out_specs=pl.BlockSpec((th, Wm, c_out), lambda i: (i, 0, 0)),
        compiler_params=pltpu.CompilerParams(
            dimension_semantics=("parallel",),
            vmem_limit_bytes=vmem_limit),
        cost_estimate=pl.CostEstimate(
            flops=2 * bhm * Wm * c4 * c_out,
            transcendentals=bhm * Wm,
            bytes_accessed=(x.size + bhm * Wm * c_out) * itemsize
                           + 2 * two_c * c_out * wt_itemsize),
    )(xr, we, wo, colsum, b2)

    return out.reshape(B, Hm, Wm, c_out)


def _reference(x, w_red, gamma, beta, *, eps: float = 1e-5):
    x0 = x[:, 0::2, 0::2, :]
    x1 = x[:, 1::2, 0::2, :]
    x2 = x[:, 0::2, 1::2, :]
    x3 = x[:, 1::2, 1::2, :]
    xc = jnp.concatenate([x0, x1, x2, x3], axis=-1)
    mu = jnp.mean(xc, axis=-1, keepdims=True)
    var = jnp.mean(jnp.square(xc - mu), axis=-1, keepdims=True)
    xn = (xc - mu) * jax.lax.rsqrt(var + eps) * gamma + beta
    return jnp.einsum("bhwk,ok->bhwo", xn, w_red)


if __name__ == "__main__":
    # Module config: dim = C = 32 -> norm over 4C = 128, output channels 2C = 64.
    B, H, W, C = 2, 16, 16, 32

    key = jax.random.PRNGKey(0)
    kx, kw, kg, kb = jax.random.split(key, 4)
    x = jax.random.normal(kx, (B, H, W, C), dtype=jnp.float32)
    # nn.Linear(4*dim, 2*dim, bias=False).weight has shape (2C, 4C)
    w_red = jax.random.normal(kw, (2 * C, 4 * C), dtype=jnp.float32) / jnp.sqrt(4.0 * C)
    # LayerNorm(4*dim) affine params (PyTorch init is ones/zeros; perturb deterministically)
    gamma = 1.0 + 0.1 * jax.random.normal(kg, (4 * C,), dtype=jnp.float32)
    beta = 0.1 * jax.random.normal(kb, (4 * C,), dtype=jnp.float32)

    out = patch_merging_2d(x, w_red, gamma, beta)
    out = jax.block_until_ready(out)

    ref = _reference(x, w_red, gamma, beta)
    assert out.shape == (B, H // 2, W // 2, 2 * C), out.shape
    max_err = float(jnp.max(jnp.abs(out - ref)))
    assert jnp.allclose(out, ref, atol=2e-4, rtol=2e-4), f"mismatch vs reference: {max_err}"

    print("KERNEL_OK")
</pallas_src>

<mosaic_0001>
module attributes {stable_mosaic.version = 11 : i64} {
  func.func @_patch_merge_kernel(%arg0: i32, %arg1: memref<2x2x8x64xf32, #tpu.memory_space<vmem>>, %arg2: memref<64x64xf32, #tpu.memory_space<vmem>>, %arg3: memref<64x64xf32, #tpu.memory_space<vmem>>, %arg4: memref<1x64xf32, #tpu.memory_space<vmem>>, %arg5: memref<1x64xf32, #tpu.memory_space<vmem>>, %arg6: memref<2x8x64xf32, #tpu.memory_space<vmem>>) attributes {dimension_semantics = [#tpu.dimension_semantics<parallel>], iteration_bounds = array<i64: 8>, scalar_prefetch = 0 : i64, scratch_operands = 0 : i64, tpu.core_type = #tpu.core_type<tc>, window_params = [{transform_indices = @transform_0, window_bounds = array<i64: 2, 2, 8, 64>}, {pipeline_mode = #tpu.pipeline_mode<synchronous>, transform_indices = @transform_1, window_bounds = array<i64: 64, 64>}, {pipeline_mode = #tpu.pipeline_mode<synchronous>, transform_indices = @transform_2, window_bounds = array<i64: 64, 64>}, {pipeline_mode = #tpu.pipeline_mode<synchronous>, transform_indices = @transform_3, window_bounds = array<i64: 1, 64>}, {pipeline_mode = #tpu.pipeline_mode<synchronous>, transform_indices = @transform_4, window_bounds = array<i64: 1, 64>}, {transform_indices = @transform_5, window_bounds = array<i64: 2, 8, 64>}]} {
    %c0 = arith.constant 0 : index
    %c0_0 = arith.constant 0 : index
    %c0_1 = arith.constant 0 : index
    %c0_2 = arith.constant 0 : index
    %0 = vector.load %arg1[%c0, %c0_0, %c0_1, %c0_2] : memref<2x2x8x64xf32, #tpu.memory_space<vmem>>, vector<2x2x8x64xf32>
    %1 = vector.extract_strided_slice %0 {offsets = [0, 0, 0, 0], sizes = [2, 1, 8, 64], strides = [1, 1, 1, 1]} : vector<2x2x8x64xf32> to vector<2x1x8x64xf32>
    %2 = vector.shape_cast %1 : vector<2x1x8x64xf32> to vector<2x8x64xf32>
    %3 = vector.shape_cast %2 : vector<2x8x64xf32> to vector<16x64xf32>
    %4 = vector.extract_strided_slice %0 {offsets = [0, 1, 0, 0], sizes = [2, 1, 8, 64], strides = [1, 1, 1, 1]} : vector<2x2x8x64xf32> to vector<2x1x8x64xf32>
    %5 = vector.shape_cast %4 : vector<2x1x8x64xf32> to vector<2x8x64xf32>
    %6 = vector.shape_cast %5 : vector<2x8x64xf32> to vector<16x64xf32>
    %cst = arith.constant dense<0.000000e+00> : vector<16xf32>
    %7 = vector.multi_reduction <add>, %3, %cst [1] : vector<16x64xf32> to vector<16xf32>
    %8 = vector.shape_cast %7 : vector<16xf32> to vector<16x1xf32>
    %9 = arith.mulf %3, %3 : vector<16x64xf32>
    %cst_3 = arith.constant dense<0.000000e+00> : vector<16xf32>
    %10 = vector.multi_reduction <add>, %9, %cst_3 [1] : vector<16x64xf32> to vector<16xf32>
    %11 = vector.shape_cast %10 : vector<16xf32> to vector<16x1xf32>
    %cst_4 = arith.constant dense<0.000000e+00> : vector<16xf32>
    %12 = vector.multi_reduction <add>, %6, %cst_4 [1] : vector<16x64xf32> to vector<16xf32>
    %13 = vector.shape_cast %12 : vector<16xf32> to vector<16x1xf32>
    %14 = arith.mulf %6, %6 : vector<16x64xf32>
    %cst_5 = arith.constant dense<0.000000e+00> : vector<16xf32>
    %15 = vector.multi_reduction <add>, %14, %cst_5 [1] : vector<16x64xf32> to vector<16xf32>
    %16 = vector.shape_cast %15 : vector<16xf32> to vector<16x1xf32>
    %17 = arith.addf %8, %13 : vector<16x1xf32>
    %cst_6 = arith.constant 7.812500e-03 : f32
    %18 = vector.broadcast %cst_6 : f32 to vector<16x1xf32>
    %19 = arith.mulf %17, %18 : vector<16x1xf32>
    %20 = arith.addf %11, %16 : vector<16x1xf32>
    %cst_7 = arith.constant 7.812500e-03 : f32
    %21 = vector.broadcast %cst_7 : f32 to vector<16x1xf32>
    %22 = arith.mulf %20, %21 : vector<16x1xf32>
    %23 = arith.mulf %19, %19 : vector<16x1xf32>
    %24 = arith.subf %22, %23 : vector<16x1xf32>
    %cst_8 = arith.constant 0.000000e+00 : f32
    %25 = vector.broadcast %cst_8 : f32 to vector<16x1xf32>
    %26 = arith.maximumf %24, %25 : vector<16x1xf32>
    %cst_9 = arith.constant 9.99999974E-6 : f32
    %27 = vector.broadcast %cst_9 : f32 to vector<16x1xf32>
    %28 = arith.addf %26, %27 : vector<16x1xf32>
    %29 = math.rsqrt %28 : vector<16x1xf32>
    %c0_10 = arith.constant 0 : index
    %c0_11 = arith.constant 0 : index
    %30 = vector.load %arg2[%c0_10, %c0_11] : memref<64x64xf32, #tpu.memory_space<vmem>>, vector<64x64xf32>
    %cst_12 = arith.constant dense<0.000000e+00> : vector<16x64xf32>
    %31 = tpu.matmul %3, %30, %cst_12 {dimension_numbers = #tpu.dot_dimension_numbers<[1], [0], [0], [1], [0, 0, 1, 1], [], []>} : vector<16x64xf32>, vector<64x64xf32>, vector<16x64xf32> -> vector<16x64xf32>
    %c0_13 = arith.constant 0 : index
    %c0_14 = arith.constant 0 : index
    %32 = vector.load %arg3[%c0_13, %c0_14] : memref<64x64xf32, #tpu.memory_space<vmem>>, vector<64x64xf32>
    %cst_15 = arith.constant dense<0.000000e+00> : vector<16x64xf32>
    %33 = tpu.matmul %6, %32, %cst_15 {dimension_numbers = #tpu.dot_dimension_numbers<[1], [0], [0], [1], [0, 0, 1, 1], [], []>} : vector<16x64xf32>, vector<64x64xf32>, vector<16x64xf32> -> vector<16x64xf32>
    %34 = arith.addf %31, %33 : vector<16x64xf32>
    %35 = vector.broadcast %29 : vector<16x1xf32> to vector<16x64xf32>
    %36 = arith.mulf %35, %34 : vector<16x64xf32>
    %c0_16 = arith.constant 0 : index
    %c0_17 = arith.constant 0 : index
    %37 = vector.load %arg5[%c0_16, %c0_17] : memref<1x64xf32, #tpu.memory_space<vmem>>, vector<1x64xf32>
    %38 = arith.mulf %29, %19 : vector<16x1xf32>
    %c0_18 = arith.constant 0 : index
    %c0_19 = arith.constant 0 : index
    %39 = vector.load %arg4[%c0_18, %c0_19] : memref<1x64xf32, #tpu.memory_space<vmem>>, vector<1x64xf32>
    %40 = vector.broadcast %38 : vector<16x1xf32> to vector<16x64xf32>
    %41 = vector.broadcast %39 : vector<1x64xf32> to vector<16x64xf32>
    %42 = arith.mulf %40, %41 : vector<16x64xf32>
    %43 = vector.broadcast %37 : vector<1x64xf32> to vector<16x64xf32>
    %44 = arith.subf %43, %42 : vector<16x64xf32>
    %45 = arith.addf %36, %44 : vector<16x64xf32>
    %46 = vector.shape_cast %45 : vector<16x64xf32> to vector<2x8x64xf32>
    %c0_20 = arith.constant 0 : index
    %c0_21 = arith.constant 0 : index
    %c0_22 = arith.constant 0 : index
    %47 = vector.load %arg6[%c0_20, %c0_21, %c0_22] : memref<2x8x64xf32, #tpu.memory_space<vmem>>, vector<2x8x64xf32>
    tpu.vector_store %arg6[%c0_20, %c0_21, %c0_22], %46 {strides = array<i32>} : memref<2x8x64xf32, #tpu.memory_space<vmem>>, vector<2x8x64xf32>,
    return
  }
  func.func @transform_0(%arg0: i32) -> (i32, i32, i32, i32) {
    %c0_i32 = arith.constant 0 : i32
    %c0_i32_0 = arith.constant 0 : i32
    %c0_i32_1 = arith.constant 0 : i32
    %c0_i32_2 = arith.constant 0 : i32
    return %arg0, %c0_i32, %c0_i32_0, %c0_i32_1 : i32, i32, i32, i32
  }
  func.func @transform_1(%arg0: i32) -> (i32, i32) {
    %c0_i32 = arith.constant 0 : i32
    %c0_i32_0 = arith.constant 0 : i32
    %c0_i32_1 = arith.constant 0 : i32
    return %c0_i32, %c0_i32_0 : i32, i32
  }
  func.func @transform_2(%arg0: i32) -> (i32, i32) {
    %c0_i32 = arith.constant 0 : i32
    %c0_i32_0 = arith.constant 0 : i32
    %c0_i32_1 = arith.constant 0 : i32
    return %c0_i32, %c0_i32_0 : i32, i32
  }
  func.func @transform_3(%arg0: i32) -> (i32, i32) {
    %c0_i32 = arith.constant 0 : i32
    %c0_i32_0 = arith.constant 0 : i32
    %c0_i32_1 = arith.constant 0 : i32
    return %c0_i32, %c0_i32_0 : i32, i32
  }
  func.func @transform_4(%arg0: i32) -> (i32, i32) {
    %c0_i32 = arith.constant 0 : i32
    %c0_i32_0 = arith.constant 0 : i32
    %c0_i32_1 = arith.constant 0 : i32
    return %c0_i32, %c0_i32_0 : i32, i32
  }
  func.func @transform_5(%arg0: i32) -> (i32, i32, i32) {
    %c0_i32 = arith.constant 0 : i32
    %c0_i32_0 = arith.constant 0 : i32
    %c0_i32_1 = arith.constant 0 : i32
    return %arg0, %c0_i32, %c0_i32_0 : i32, i32, i32
  }
}

</mosaic_0001>

<llo_original>
// kernel: tpu_custom_call.1
$region0: #{tpu_custom_call.1}
  #allocation0 [shape = 'u32[]', space=smem, size = 0x4, offset = 0x4, fixed_abs, tag = 'smem constant byte address 0x4 - core index']
  #allocation1 [shape = 'u32[144,128]{1,0:T(1,128)}', space=vmem, size = 0x12000, scoped, tag = 'internal scratch']
  %s0 = inlined_call_operand.hbm [shape: f32[16,2,8,64], index: 0, kind: input, shape index: {}]
  %s1 = inlined_call_operand.hbm [shape: f32[64,64], index: 1, kind: input, shape index: {}]
  %s2 = inlined_call_operand.hbm [shape: f32[64,64], index: 2, kind: input, shape index: {}]
  %s3 = inlined_call_operand.vmem [shape: f32[1,64], index: 3, kind: input, shape index: {}]
  %s4 = inlined_call_operand.vmem [shape: f32[1,64], index: 4, kind: input, shape index: {}]
  %s5 = inlined_call_operand.hbm [shape: f32[16,8,64], index: 5, kind: output, shape index: {}]
  %s6 = sld [smem:[#allocation0]]
  $region65: #{tpu_custom_call.1} parent=0
    _
  %s8 = ssub.s32 1, %s6
  %s9 = scalar_select 0, %s8, %s6
  $region1: #{tpu_custom_call.1} parent=0
    #allocation2 [shape = 'u8[32768]{0}', space=vmem, size = 0x8000, scoped, tag = 'input window, operand 0']
    #allocation3 [shape = 's32[2]{0}', space=sflag, size = 0x8, scoped, tag = 'scoped memory for tpu_custom_call.1']
    #allocation4 [shape = 's32[2]{0}', space=sflag, size = 0x8, scoped, tag = 'scoped memory for tpu_custom_call.1']
    #allocation5 [shape = 'u8[32768]{0}', space=vmem, size = 0x8000, scoped, tag = 'input window, operand 1, single buffered']
    #allocation6 [shape = 's32[1]{0}', space=sflag, size = 0x4, scoped, tag = 'scoped memory for tpu_custom_call.1']
    #allocation7 [shape = 'u8[32768]{0}', space=vmem, size = 0x8000, scoped, tag = 'input window, operand 2, single buffered']
    #allocation8 [shape = 'u8[16384]{0}', space=vmem, size = 0x4000, scoped, tag = 'output window, operand 0']
    %10 = vsyncpa [#allocation3], 0
    %s11 = scalar_lea.sflag [#allocation3], 1
    %12 = vsyncpa %s11, 0
    %13 = vsyncpa [#allocation6], 0
    %14 = vsyncpa [#allocation4], 0
    %s15 = scalar_lea.sflag [#allocation4], 1
    %16 = vsyncpa %s15, 0
    loop: start=0, step=1, limit=10
    $region2: #{tpu_custom_call.1} parent=1 // loop_pre_header
      _
    $region3: #{tpu_custom_call.1} parent=1 // loop_header
      %s18 = sphi 0, %s22
      %p19 = scmp.ge.s32.totalorder %s18, 10
      %s28 = sphi 0, %s30
      %s31 = sphi 0, %s28
      %s32 = sphi 0, %s31
      %s48 = sphi 0, %s32
      %s52 = sphi 0, %s52
      %s54 = sphi 0, %s52
      %s55 = sphi 0, %s54
      %s69 = sphi 0, %s55
      %s73 = sphi 0, %s73
      %s75 = sphi 0, %s73
      %s76 = sphi 0, %s75
      %s90 = sphi 0, %s76
      %s94 = sphi 0, %s94
      %s96 = sphi 0, %s94
      %s97 = sphi 0, %s96
      %s111 = sphi 0, %s97
      %s115 = sphi 0, %s115
      %s117 = sphi 0, %s115
      %s118 = sphi 0, %s117
      %s132 = sphi 0, %s118
      %s138 = sphi 0, %s140
      %s141 = sphi 0, %s138
      %s142 = sphi 0, %s141
      %s158 = sphi 0, %s142
    $region4: #{tpu_custom_call.1} parent=1 // loop_header_branch
      %21 = sbr.rel (%p19) target = $region8
    $region5: #{tpu_custom_call.1} parent=1 // loop_body
      %s23 = ssub.s32 %s18, 1
      %s24 = ssub.s32 %s18, 2
      %s25 = sadd.s32 %s18, 1
      %s26 = ssub.s32 %s18, %s25
      %p27 = scmp.eq.s32.totalorder %s26, 0
      %s29 = sadd.s32 %s28, 1
      %s30 = scalar_select %p27, %s28, %s29
      %p33 = pneg %p27
      %p34 = scmp.eq.s32.totalorder %s18, 7
      %p35 = por %p33, %p34
      %p36 = scmp.ne.s32.totalorder %s28, %s31
      %p37 = scmp.eq.s32.totalorder %s18, 0
      %p38 = por %p36, %p37
      %p39 = scmp.ne.s32.totalorder %s28, %s31
      %p40 = scmp.eq.s32.totalorder %s23, 7
      %p41 = por %p39, %p40
      %p42 = scmp.ne.s32.totalorder %s31, %s32
      %p43 = scmp.eq.s32.totalorder %s23, 0
      %p44 = por %p42, %p43
      %p45 = scmp.ne.s32.totalorder %s31, %s32
      %p46 = scmp.eq.s32.totalorder %s24, 7
      %p47 = por %p45, %p46
      %p49 = scmp.ne.s32.totalorder %s32, %s48
      %p50 = scmp.eq.s32.totalorder %s24, 0
      %p51 = por %p49, %p50
      %s53 = sadd.s32 %s52, 1
      %p56 = scmp.eq.s32.totalorder %s18, 7
      %p57 = scmp.ne.s32.totalorder %s52, %s54
      %p58 = scmp.eq.s32.totalorder %s18, 0
      %p59 = por %p57, %p58
      %p60 = scmp.ne.s32.totalorder %s52, %s54
      %p61 = scmp.eq.s32.totalorder %s23, 7
      %p62 = por %p60, %p61
      %p63 = scmp.ne.s32.totalorder %s54, %s55
      %p64 = scmp.eq.s32.totalorder %s23, 0
      %p65 = por %p63, %p64
      %p66 = scmp.ne.s32.totalorder %s54, %s55
      %p67 = scmp.eq.s32.totalorder %s24, 7
      %p68 = por %p66, %p67
      %p70 = scmp.ne.s32.totalorder %s55, %s69
      %p71 = scmp.eq.s32.totalorder %s24, 0
      %p72 = por %p70, %p71
      %s74 = sadd.s32 %s73, 1
      %p77 = scmp.eq.s32.totalorder %s18, 7
      %p78 = scmp.ne.s32.totalorder %s73, %s75
      %p79 = scmp.eq.s32.totalorder %s18, 0
      %p80 = por %p78, %p79
      %p81 = scmp.ne.s32.totalorder %s73, %s75
      %p82 = scmp.eq.s32.totalorder %s23, 7
      %p83 = por %p81, %p82
      %p84 = scmp.ne.s32.totalorder %s75, %s76
      %p85 = scmp.eq.s32.totalorder %s23, 0
      %p86 = por %p84, %p85
      %p87 = scmp.ne.s32.totalorder %s75, %s76
      %p88 = scmp.eq.s32.totalorder %s24, 7
      %p89 = por %p87, %p88
      %p91 = scmp.ne.s32.totalorder %s76, %s90
      %p92 = scmp.eq.s32.totalorder %s24, 0
      %p93 = por %p91, %p92
      %s95 = sadd.s32 %s94, 1
      %p98 = scmp.eq.s32.totalorder %s18, 7
      %p99 = scmp.ne.s32.totalorder %s94, %s96
      %p100 = scmp.eq.s32.totalorder %s18, 0
      %p101 = por %p99, %p100
      %p102 = scmp.ne.s32.totalorder %s94, %s96
      %p103 = scmp.eq.s32.totalorder %s23, 7
      %p104 = por %p102, %p103
      %p105 = scmp.ne.s32.totalorder %s96, %s97
      %p106 = scmp.eq.s32.totalorder %s23, 0
      %p107 = por %p105, %p106
      %p108 = scmp.ne.s32.totalorder %s96, %s97
      %p109 = scmp.eq.s32.totalorder %s24, 7
      %p110 = por %p108, %p109
      %p112 = scmp.ne.s32.totalorder %s97, %s111
      %p113 = scmp.eq.s32.totalorder %s24, 0
      %p114 = por %p112, %p113
      %s116 = sadd.s32 %s115, 1
      %p119 = scmp.eq.s32.totalorder %s18, 7
      %p120 = scmp.ne.s32.totalorder %s115, %s117
      %p121 = scmp.eq.s32.totalorder %s18, 0
      %p122 = por %p120, %p121
      %p123 = scmp.ne.s32.totalorder %s115, %s117
      %p124 = scmp.eq.s32.totalorder %s23, 7
      %p125 = por %p123, %p124
      %p126 = scmp.ne.s32.totalorder %s117, %s118
      %p127 = scmp.eq.s32.totalorder %s23, 0
      %p128 = por %p126, %p127
      %p129 = scmp.ne.s32.totalorder %s117, %s118
      %p130 = scmp.eq.s32.totalorder %s24, 7
      %p131 = por %p129, %p130
      %p133 = scmp.ne.s32.totalorder %s118, %s132
      %p134 = scmp.eq.s32.totalorder %s24, 0
      %p135 = por %p133, %p134
      %s136 = ssub.s32 %s18, %s25
      %p137 = scmp.eq.s32.totalorder %s136, 0
      %s139 = sadd.s32 %s138, 1
      %s140 = scalar_select %p137, %s138, %s139
      %p143 = pneg %p137
      %p144 = scmp.eq.s32.totalorder %s18, 7
      %p145 = por %p143, %p144
      %p146 = scmp.ne.s32.totalorder %s138, %s141
      %p147 = scmp.eq.s32.totalorder %s18, 0
      %p148 = por %p146, %p147
      %p149 = scmp.ne.s32.totalorder %s138, %s141
      %p150 = scmp.eq.s32.totalorder %s23, 7
      %p151 = por %p149, %p150
      %p152 = scmp.ne.s32.totalorder %s141, %s142
      %p153 = scmp.eq.s32.totalorder %s23, 0
      %p154 = por %p152, %p153
      %p155 = scmp.ne.s32.totalorder %s141, %s142
      %p156 = scmp.eq.s32.totalorder %s24, 7
      %p157 = por %p155, %p156
      %p159 = scmp.ne.s32.totalorder %s142, %s158
      %p160 = scmp.eq.s32.totalorder %s24, 0
      %p161 = por %p159, %p160
      %p162 = scmp.le.s32.totalorder 1, %s18
      %p163 = scmp.lt.s32.totalorder %s18, 9
      %p164 = pnand %p162, %p163
      %p165 = pneg %p164
      // Predicated region
      $region9: #{tpu_custom_call.1} parent=5 // pred_check
        _
      $region10: #{tpu_custom_call.1} parent=5 // pred_check_branch
        %167 = sbr.rel (%p164) target = $region12
      $region11: #{tpu_custom_call.1} parent=5 // pred_region
        %s168 = ssub.s32 %s18, 1
        // Predicated region
        $region13: #{tpu_custom_call.1} parent=11 // pred_check
          %p169 = pneg %p65
        $region14: #{tpu_custom_call.1} parent=11 // pred_check_branch
          %171 = sbr.rel (%p169) target = $region16
        $region15: #{tpu_custom_call.1} parent=11 // pred_region
          %s173 = ssub.s32 1024, 1024
          %174 = vsyncadd [#allocation6], %s173
          %s175 = sshll.u32 [#allocation5], 4
          %s176 = int_to_ptr.vmem [resolvable:$true] %s175
          %181 = dma.hbm_to_vmem [thread:$0]  %s1, 1024, %s176, [#allocation6], 128, 128, 8
        $region16: #{tpu_custom_call.1} parent=11 // pred_fallthru
          _
        // Predicated region
        $region17: #{tpu_custom_call.1} parent=11 // pred_check
          %p182 = pneg %p86
        $region18: #{tpu_custom_call.1} parent=11 // pred_check_branch
          %184 = sbr.rel (%p182) target = $region20
        $region19: #{tpu_custom_call.1} parent=11 // pred_region
          %s186 = ssub.s32 1024, 1024
          %187 = vsyncadd [#allocation6], %s186
          %s188 = sshll.u32 [#allocation7], 4
          %s189 = int_to_ptr.vmem [resolvable:$true] %s188
          %194 = dma.hbm_to_vmem [thread:$0]  %s2, 1024, %s189, [#allocation6], 128, 128, 8
        $region20: #{tpu_custom_call.1} parent=11 // pred_fallthru
          _
        // Predicated region
        $region21: #{tpu_custom_call.1} parent=11 // pred_check
          %p195 = pneg %p107
        $region22: #{tpu_custom_call.1} parent=11 // pred_check_branch
          %197 = sbr.rel (%p195) target = $region24
        $region23: #{tpu_custom_call.1} parent=11 // pred_region
          _
        $region24: #{tpu_custom_call.1} parent=11 // pred_fallthru
          _
        // Predicated region
        $region25: #{tpu_custom_call.1} parent=11 // pred_check
          %p198 = pneg %p128
        $region26: #{tpu_custom_call.1} parent=11 // pred_check_branch
          %200 = sbr.rel (%p198) target = $region28
        $region27: #{tpu_custom_call.1} parent=11 // pred_region
          _
        $region28: #{tpu_custom_call.1} parent=11 // pred_fallthru
          _
      $region12: #{tpu_custom_call.1} parent=5 // pred_fallthru
        _
      %p201 = scmp.lt.s32.totalorder %s18, 8
      // Predicated region
      $region29: #{tpu_custom_call.1} parent=5 // pred_check
        %p202 = pneg %p201
      $region30: #{tpu_custom_call.1} parent=5 // pred_check_branch
        %204 = sbr.rel (%p202) target = $region32
      $region31: #{tpu_custom_call.1} parent=5 // pred_region
        // Predicated region
        $region33: #{tpu_custom_call.1} parent=31 // pred_check
          %p205 = pneg %p38
        $region34: #{tpu_custom_call.1} parent=31 // pred_check_branch
          %207 = sbr.rel (%p205) target = $region36
        $region35: #{tpu_custom_call.1} parent=31 // pred_region
          %s208 = sand.u32 %s28, 1
          %s209 = scalar_lea.sflag [#allocation3], %s208
          %s210 = sand.u32 %s28, 1
          %s211 = smul.addr %s210, 32
          %s212 = scalar_lea.vmem [#allocation2], %s211
          %s213 = smul.u32 2, %s18
          %s215 = ssub.s32 512, 512
          %216 = vsyncadd %s209, %s215
          %s217 = smul.addr %s213, 2
          %s218 = smul.addr %s217, 128
          %s219 = scalar_lea.hbm %s0, %s218
          %s220 = sshll.u32 %s212, 4
          %s221 = int_to_ptr.vmem [resolvable:$true] %s220
          %226 = dma.hbm_to_vmem [thread:$0]  %s219, 512, %s221, %s209, 128, 128, 8
        $region36: #{tpu_custom_call.1} parent=31 // pred_fallthru
          _
      $region32: #{tpu_custom_call.1} parent=5 // pred_fallthru
        _
      %p227 = scmp.le.s32.totalorder 1, %s18
      %p228 = scmp.lt.s32.totalorder %s18, 9
      %p229 = pnand %p227, %p228
      %p230 = pneg %p229
      // Predicated region
      $region37: #{tpu_custom_call.1} parent=5 // pred_check
        _
      $region38: #{tpu_custom_call.1} parent=5 // pred_check_branch
        %232 = sbr.rel (%p229) target = $region40
      $region39: #{tpu_custom_call.1} parent=5 // pred_region
        %s233 = ssub.s32 %s18, 1
        %s234 = sand.u32 %s31, 1
        %s235 = scalar_lea.sflag [#allocation3], %s234
        %s236 = sand.u32 %s31, 1
        %s237 = smul.addr %s236, 32
        %s238 = scalar_lea.vmem [#allocation2], %s237
        // Predicated region
        $region41: #{tpu_custom_call.1} parent=39 // pred_check
          %p239 = pneg %p44
        $region42: #{tpu_custom_call.1} parent=39 // pred_check_branch
          %241 = sbr.rel (%p239) target = $region44
        $region43: #{tpu_custom_call.1} parent=39 // pred_region
          %242 = dma.done %s235, 512
        $region44: #{tpu_custom_call.1} parent=39 // pred_fallthru
          _
        // Predicated region
        $region45: #{tpu_custom_call.1} parent=39 // pred_check
          %p243 = pneg %p65
        $region46: #{tpu_custom_call.1} parent=39 // pred_check_branch
          %245 = sbr.rel (%p243) target = $region48
        $region47: #{tpu_custom_call.1} parent=39 // pred_region
          %246 = dma.done [#allocation6], 1024
        $region48: #{tpu_custom_call.1} parent=39 // pred_fallthru
          _
        // Predicated region
        $region49: #{tpu_custom_call.1} parent=39 // pred_check
          %p247 = pneg %p86
        $region50: #{tpu_custom_call.1} parent=39 // pred_check_branch
          %249 = sbr.rel (%p247) target = $region52
        $region51: #{tpu_custom_call.1} parent=39 // pred_region
          %250 = dma.done [#allocation6], 1024
        $region52: #{tpu_custom_call.1} parent=39 // pred_fallthru
          _
        %s251 = sand.u32 %s31, 1
        %s252 = scalar_lea.sflag [#allocation3], %s251
        %s253 = sand.u32 %s31, 1
        %s254 = smul.addr %s253, 32
        %s255 = scalar_lea.vmem [#allocation2], %s254
        %p256 = pneg %p44
        %p257 = pneg %p41
        %p258 = pneg %p65
        %p259 = pneg %p62
        %p260 = pneg %p86
        %p261 = pneg %p83
        %p262 = pneg %p107
        %p263 = pneg %p104
        %p264 = pneg %p128
        %p265 = pneg %p125
        %p266 = pneg %p154
        %p267 = pneg %p151
        %s268 = sand.u32 %s141, 1
        %s269 = scalar_lea.sflag [#allocation4], %s268
        %s270 = sand.u32 %s141, 1
        %s271 = smul.addr %s270, 16
        %s272 = scalar_lea.vmem [#allocation8], %s271
        %s273 = smul.u32 2, %s23
        %s274 = smul.u32 2, %s23
        %v275 = vld [vmem:[%s238] sm:$0xff]
        %v276 = vld [vmem:[%s238 + $0x8] sm:$0xff]
        %v277 = vld [vmem:[%s238 + $0x10] sm:$0xff]
        %v278 = vld [vmem:[%s238 + $0x18] sm:$0xff]
        %vm279 = vcmask 523264
        %v280 = vsel %vm279, %v275, 0.0
        %281 = vadd.xlane.f32.xlu0 %v280
        %v282 = vpop.xlane.xlu0 %281
        %v283 = vsel %vm279, %v277, 0.0
        %284 = vadd.xlane.f32.xlu0 %v283
        %v285 = vpop.xlane.xlu0 %284
        %v286 = vmul.f32 %v275, %v275
        %v287 = vmul.f32 %v277, %v277
        %v288 = vsel %vm279, %v286, 0.0
        %289 = vadd.xlane.f32.xlu0 %v288
        %v290 = vpop.xlane.xlu0 %289
        %v291 = vsel %vm279, %v287, 0.0
        %292 = vadd.xlane.f32.xlu0 %v291
        %v293 = vpop.xlane.xlu0 %292
        %v294 = vsel %vm279, %v276, 0.0
        %295 = vadd.xlane.f32.xlu0 %v294
        %v296 = vpop.xlane.xlu0 %295
        %v297 = vsel %vm279, %v278, 0.0
        %298 = vadd.xlane.f32.xlu0 %v297
        %v299 = vpop.xlane.xlu0 %298
        %v300 = vmul.f32 %v276, %v276
        %v301 = vmul.f32 %v278, %v278
        %v302 = vsel %vm279, %v300, 0.0
        %303 = vadd.xlane.f32.xlu0 %v302
        %v304 = vpop.xlane.xlu0 %303
        %v305 = vsel %vm279, %v301, 0.0
        %306 = vadd.xlane.f32.xlu0 %v305
        %v307 = vpop.xlane.xlu0 %306
        %v308 = vadd.f32 %v282, %v296
        %v309 = vadd.f32 %v285, %v299
        %v310 = vmul.f32 %v308, 0.0078125
        %v311 = vmul.f32 %v309, 0.0078125
        %v312 = vadd.f32 %v290, %v304
        %v313 = vadd.f32 %v293, %v307
        %v314 = vmul.f32 %v312, 0.0078125
        %v315 = vmul.f32 %v313, 0.0078125
        %v316 = vmul.f32 %v310, %v310
        %v317 = vmul.f32 %v311, %v311
        %v318 = vsub.f32 %v314, %v316
        %v319 = vsub.f32 %v315, %v317
        %v320 = vmax.f32 %v318, 0.0
        %v321 = vmax.f32 %v319, 0.0
        %v322 = vadd.f32 %v320, 1e-05
        %v323 = vadd.f32 %v321, 1e-05
        %v324 = vrsqrt.pop %v322
        %v325 = vrsqrt.pop %v323
        %v326 = vld [vmem:[#allocation5] sm:$0xff]
        %v327 = vld [vmem:[#allocation5 + $0x8] sm:$0xff]
        %v328 = vld [vmem:[#allocation5 + $0x10] sm:$0xff]
        %v329 = vld [vmem:[#allocation5 + $0x18] sm:$0xff]
        %v330 = vld [vmem:[#allocation5 + $0x20] sm:$0xff]
        %v331 = vld [vmem:[#allocation5 + $0x28] sm:$0xff]
        %v332 = vld [vmem:[#allocation5 + $0x30] sm:$0xff]
        %v333 = vld [vmem:[#allocation5 + $0x38] sm:$0xff]
        %v334 = vld [vmem:[#allocation7] sm:$0xff]
        %v335 = vld [vmem:[#allocation7 + $0x8] sm:$0xff]
        %v336 = vld [vmem:[#allocation7 + $0x10] sm:$0xff]
        %v337 = vld [vmem:[#allocation7 + $0x18] sm:$0xff]
        %v338 = vld [vmem:[#allocation7 + $0x20] sm:$0xff]
        %v339 = vld [vmem:[#allocation7 + $0x28] sm:$0xff]
        %v340 = vld [vmem:[#allocation7 + $0x30] sm:$0xff]
        %v341 = vld [vmem:[#allocation7 + $0x38] sm:$0xff]
        %v343 = vsel %vm279, %v276, 0
        %v346 = vsel %vm279, %v278, 0
        %348 = vmatprep.subr.mxu0 0.0
        %349 = vmatpush1.msra.mxu0 %v334
        %350 = vmatprep.subr.mxu0 0.0
        %351 = vmatpush1.msra.mxu0 %v335
        %352 = vmatprep.subr.mxu0 0.0
        %353 = vmatpush1.msra.mxu0 %v336
        %354 = vmatprep.subr.mxu0 0.0
        %355 = vmatpush1.msra.mxu0 %v337
        %356 = vmatprep.subr.mxu0 0.0
        %357 = vmatpush1.msra.mxu0 %v338
        %358 = vmatprep.subr.mxu0 0.0
        %359 = vmatpush1.msra.mxu0 %v339
        %360 = vmatprep.subr.mxu0 0.0
        %361 = vmatpush1.msra.mxu0 %v340
        %362 = vmatprep.subr.mxu0 0.0
        %363 = vmatpush1.msra.mxu0 %v341
        %364 = vmatprep.subr.mxu0 0.0
        %365 = vmatpush1.msra.mxu0 0.0
        %366 = vmatprep.subr.mxu0 0.0
        %367 = vmatpush1.msra.mxu0 0.0
        %368 = vmatprep.subr.mxu0 0.0
        %369 = vmatpush1.msra.mxu0 0.0
        %370 = vmatprep.subr.mxu0 0.0
        %371 = vmatpush1.msra.mxu0 0.0
        %372 = vmatprep.subr.mxu0 0.0
        %373 = vmatpush1.msra.mxu0 0.0
        %374 = vmatprep.subr.mxu0 0.0
        %375 = vmatpush1.msra.mxu0 0.0
        %376 = vmatprep.subr.mxu0 0.0
        %377 = vmatpush1.msra.mxu0 0.0
        %378 = vmatprep.subr.mxu0 0.0
        %379 = vmatpush1.msra.mxu0 0.0
        %380 = vmatprep.subr.mxu0 0.0
        %381 = vmatpush1.msra.mxu0 0.0
        %382 = vmatprep.subr.mxu0 0.0
        %383 = vmatpush1.msra.mxu0 0.0
        %384 = vmatprep.subr.mxu0 0.0
        %385 = vmatpush1.msra.mxu0 0.0
        %386 = vmatprep.subr.mxu0 0.0
        %387 = vmatpush1.msra.mxu0 0.0
        %388 = vmatprep.subr.mxu0 0.0
        %389 = vmatpush1.msra.mxu0 0.0
        %390 = vmatprep.subr.mxu0 0.0
        %391 = vmatpush1.msra.mxu0 0.0
        %392 = vmatprep.subr.mxu0 0.0
        %393 = vmatpush1.msra.mxu0 0.0
        %394 = vmatprep.subr.mxu0 0.0
        %395 = vmatpush1.msra.mxu0 0.0
        %396 = vmatprep.subr.mxu0 0.0
        %397 = vmatpush1.msra.mxu0 0.0
        %398 = vmatprep.subr.mxu0 0.0
        %399 = vmatpush1.msra.mxu0 0.0
        %400 = vmatprep.subr.mxu0 0.0
        %401 = vmatpush1.msra.mxu0 0.0
        %402 = vmatprep.subr.mxu0 0.0
        %403 = vmatpush1.msra.mxu0 0.0
        %404 = vmatprep.subr.mxu0 0.0
        %405 = vmatpush1.msra.mxu0 0.0
        %406 = vmatprep.subr.mxu0 0.0
        %407 = vmatpush1.msra.mxu0 0.0
        %408 = vmatprep.subr.mxu0 0.0
        %409 = vmatpush1.msra.mxu0 0.0
        %410 = vmatprep.subr.mxu0 0.0
        %411 = vmatpush1.msra.mxu0 0.0
        %412 = vmatprep.mubr.f32.mxu0 0.0
        %413 = vmatmul.mubr.f32.gmra.mrb[0].mxu0 %v343
        %v414 = vpop.f32.mrb[0].mxu0
        %v415 = vadd.f32 0.0, %v414
        %v416 = vpop.f32.mrb[0].mxu0
        %417 = vmatprep.mubr.f32.mxu0 0.0
        %418 = vmatmul.mubr.f32.gmra.mrb[0].mxu0 %v346
        %v419 = vpop.f32.mrb[0].mxu0
        %v420 = vadd.f32 0.0, %v419
        %v421 = vpop.f32.mrb[0].mxu0
        %422 = vdwg.mxu0
        %v424 = vsel %vm279, %v275, 0
        %v427 = vsel %vm279, %v277, 0
        %429 = vmatprep.subr.mxu0 0.0
        %430 = vmatpush1.msra.mxu0 %v326
        %431 = vmatprep.subr.mxu0 0.0
        %432 = vmatpush1.msra.mxu0 %v327
        %433 = vmatprep.subr.mxu0 0.0
        %434 = vmatpush1.msra.mxu0 %v328
        %435 = vmatprep.subr.mxu0 0.0
        %436 = vmatpush1.msra.mxu0 %v329
        %437 = vmatprep.subr.mxu0 0.0
        %438 = vmatpush1.msra.mxu0 %v330
        %439 = vmatprep.subr.mxu0 0.0
        %440 = vmatpush1.msra.mxu0 %v331
        %441 = vmatprep.subr.mxu0 0.0
        %442 = vmatpush1.msra.mxu0 %v332
        %443 = vmatprep.subr.mxu0 0.0
        %444 = vmatpush1.msra.mxu0 %v333
        %445 = vmatprep.subr.mxu0 0.0
        %446 = vmatpush1.msra.mxu0 0.0
        %447 = vmatprep.subr.mxu0 0.0
        %448 = vmatpush1.msra.mxu0 0.0
        %449 = vmatprep.subr.mxu0 0.0
        %450 = vmatpush1.msra.mxu0 0.0
        %451 = vmatprep.subr.mxu0 0.0
        %452 = vmatpush1.msra.mxu0 0.0
        %453 = vmatprep.subr.mxu0 0.0
        %454 = vmatpush1.msra.mxu0 0.0
        %455 = vmatprep.subr.mxu0 0.0
        %456 = vmatpush1.msra.mxu0 0.0
        %457 = vmatprep.subr.mxu0 0.0
        %458 = vmatpush1.msra.mxu0 0.0
        %459 = vmatprep.subr.mxu0 0.0
        %460 = vmatpush1.msra.mxu0 0.0
        %461 = vmatprep.subr.mxu0 0.0
        %462 = vmatpush1.msra.mxu0 0.0
        %463 = vmatprep.subr.mxu0 0.0
        %464 = vmatpush1.msra.mxu0 0.0
        %465 = vmatprep.subr.mxu0 0.0
        %466 = vmatpush1.msra.mxu0 0.0
        %467 = vmatprep.subr.mxu0 0.0
        %468 = vmatpush1.msra.mxu0 0.0
        %469 = vmatprep.subr.mxu0 0.0
        %470 = vmatpush1.msra.mxu0 0.0
        %471 = vmatprep.subr.mxu0 0.0
        %472 = vmatpush1.msra.mxu0 0.0
        %473 = vmatprep.subr.mxu0 0.0
        %474 = vmatpush1.msra.mxu0 0.0
        %475 = vmatprep.subr.mxu0 0.0
        %476 = vmatpush1.msra.mxu0 0.0
        %477 = vmatprep.subr.mxu0 0.0
        %478 = vmatpush1.msra.mxu0 0.0
        %479 = vmatprep.subr.mxu0 0.0
        %480 = vmatpush1.msra.mxu0 0.0
        %481 = vmatprep.subr.mxu0 0.0
        %482 = vmatpush1.msra.mxu0 0.0
        %483 = vmatprep.subr.mxu0 0.0
        %484 = vmatpush1.msra.mxu0 0.0
        %485 = vmatprep.subr.mxu0 0.0
        %486 = vmatpush1.msra.mxu0 0.0
        %487 = vmatprep.subr.mxu0 0.0
        %488 = vmatpush1.msra.mxu0 0.0
        %489 = vmatprep.subr.mxu0 0.0
        %490 = vmatpush1.msra.mxu0 0.0
        %491 = vmatprep.subr.mxu0 0.0
        %492 = vmatpush1.msra.mxu0 0.0
        %493 = vmatprep.mubr.f32.mxu0 0.0
        %494 = vmatmul.mubr.f32.gmra.mrb[0].mxu0 %v424
        %v495 = vpop.f32.mrb[0].mxu0
        %v496 = vadd.f32 %v415, %v495
        %v497 = vpop.f32.mrb[0].mxu0
        %498 = vmatprep.mubr.f32.mxu0 0.0
        %499 = vmatmul.mubr.f32.gmra.mrb[0].mxu0 %v427
        %v500 = vpop.f32.mrb[0].mxu0
        %v501 = vadd.f32 %v420, %v500
        %v502 = vpop.f32.mrb[0].mxu0
        %503 = vdwg.mxu0
        %v504 = vmul.f32 %v324, %v496
        %v505 = vmul.f32 %v325, %v501
        %v506 = vld [vmem:[%s4] sm:$0x1]
        %v507 = vmul.f32 %v324, %v310
        %v508 = vmul.f32 %v325, %v311
        %v509 = vld [vmem:[%s3] sm:$0x1]
        %v511 = vlaneseq
        %v512 = vshrl.u32 %v511, 7
        %v513 = vsub.s32 0, %v512
        %v514 = vrot.slane %v509, %v513
        %v516 = vmul.f32 %v507, %v514
        %v517 = vmul.f32 %v508, %v514
        %v519 = vlaneseq
        %v520 = vshrl.u32 %v519, 7
        %v521 = vsub.s32 0, %v520
        %v522 = vrot.slane %v506, %v521
        %v524 = vsub.f32 %v522, %v516
        %v525 = vsub.f32 %v522, %v517
        %v526 = vadd.f32 %v504, %v524
        %v527 = vadd.f32 %v505, %v525
        %528 = vst.msk [vmem:[%s272] sm:$0xff] %vm279, %v526
        %529 = vst.msk [vmem:[%s272 + $0x8] sm:$0xff] %vm279, %v527
        %s530 = sand.u32 %s141, 1
        %s531 = scalar_lea.sflag [#allocation4], %s530
        %s532 = sand.u32 %s141, 1
        %s533 = smul.addr %s532, 16
        %s534 = scalar_lea.vmem [#allocation8], %s533
        // Predicated region
        $region53: #{tpu_custom_call.1} parent=39 // pred_check
          %p535 = pneg %p151
        $region54: #{tpu_custom_call.1} parent=39 // pred_check_branch
          %537 = sbr.rel (%p535) target = $region56
        $region55: #{tpu_custom_call.1} parent=39 // pred_region
          %s538 = smul.u32 2, %s23
          %s540 = ssub.s32 256, 256
          %541 = vsyncadd %s531, %s540
          %s542 = smul.addr %s538, 128
          %s543 = scalar_lea.hbm %s5, %s542
          %s544 = sshll.u32 %s534, 4
          %s545 = int_to_ptr.vmem [resolvable:$true] %s544
          %550 = dma.vmem_to_hbm [thread:$0]  %s545, 256, %s543, %s531, 128, 128, 8
        $region56: #{tpu_custom_call.1} parent=39 // pred_fallthru
          _
      $region40: #{tpu_custom_call.1} parent=5 // pred_fallthru
        _
      %p551 = scmp.le.s32.totalorder 2, %s18
      // Predicated region
      $region57: #{tpu_custom_call.1} parent=5 // pred_check
        %p552 = pneg %p551
      $region58: #{tpu_custom_call.1} parent=5 // pred_check_branch
        %554 = sbr.rel (%p552) target = $region60
      $region59: #{tpu_custom_call.1} parent=5 // pred_region
        %s555 = ssub.s32 %s18, 2
        // Predicated region
        $region61: #{tpu_custom_call.1} parent=59 // pred_check
          %p556 = pneg %p157
        $region62: #{tpu_custom_call.1} parent=59 // pred_check_branch
          %558 = sbr.rel (%p556) target = $region64
        $region63: #{tpu_custom_call.1} parent=59 // pred_region
          %s559 = sand.u32 %s142, 1
          %s560 = scalar_lea.sflag [#allocation4], %s559
          %s561 = sand.u32 %s142, 1
          %s562 = smul.addr %s561, 16
          %s563 = scalar_lea.vmem [#allocation8], %s562
          %564 = dma.done %s560, 256
        $region64: #{tpu_custom_call.1} parent=59 // pred_fallthru
          _
      $region60: #{tpu_custom_call.1} parent=5 // pred_fallthru
        _
    $region6: #{tpu_custom_call.1} parent=1 // loop_footer
      %s22 = sadd.s32 1, %s18
    $region7: #{tpu_custom_call.1} parent=1 // loop_footer_branch
      %17 = sbr.rel target = $region3
    $region8: #{tpu_custom_call.1} parent=1 // loop_exit
      _
    %565 = vsyncpa [#allocation3], 1
    %s566 = scalar_lea.sflag [#allocation3], 1
    %567 = vsyncpa %s566, 1
    %568 = vsyncpa [#allocation6], 1
    %569 = vsyncpa [#allocation4], 1
    %s570 = scalar_lea.sflag [#allocation4], 1
    %571 = vsyncpa %s570, 1

</llo_original>
